<compile_context>
chip_gen: v7x
topology: tpu7x:2x2x1
jax: 0.10.0
libtpu: 0.0.40
codegen_flags: <defaults>
</compile_context>

<pallas_src>
import functools
import math

import jax
import jax.numpy as jnp
from jax.experimental import pallas as pl
from jax.experimental.pallas import tpu as pltpu


def _weighted_rowsum_kernel(pred_ref, mw_ref, out_ref, acc_ref, *,
                            lane_groups, sublane_groups):
    """grid = (row tiles, vocab chunks).

    pred_ref : (TILE_N, TILE_V) log-probs, native dtype
    mw_ref   : (TILE_N, 1)      float32 mask * weights (0 for padded rows)
    out_ref  : (8, 128)         float32 lane-dense partial for this row tile
    acc_ref  : (TILE_N, 128)    float32 scratch accumulator
    """
    c = pl.program_id(1)

    @pl.when(c == 0)
    def _():
        acc_ref[...] = jnp.zeros_like(acc_ref)

    # Lane-dense partial row sums: one f32 add per element; the only live
    # temporaries are (TILE_N, 128) vregs (the bf16->f32 upcast is per
    # lane-group, never a full-tile f32 copy).
    s = acc_ref[...]
    for g in range(lane_groups):
        s = s + pred_ref[:, g * 128:(g + 1) * 128].astype(jnp.float32)
    acc_ref[...] = s

    @pl.when(c == pl.num_programs(1) - 1)
    def _():
        weighted = s * mw_ref[...]                       # (TILE_N, 128)
        part = weighted[0:8, :]
        for b in range(1, sublane_groups):               # vreg-granular adds
            part = part + weighted[b * 8:(b + 1) * 8, :]
        out_ref[...] = part                              # lane-dense store


def _vmem_budget():
    """(physical VMEM bytes, pipelined-buffer budget bytes), generation aware."""
    cap = 64 << 20                        # conservative default (v7x per-core)
    try:
        info = pltpu.get_tpu_info()
        cap = int(getattr(info, "vmem_capacity_bytes", cap) or cap)
    except Exception:
        pass
    buf_budget = min(24 << 20, cap // 4)  # v5e/v6e: 24 MiB, v7x: 16 MiB
    return cap, buf_budget


def _choose_vocab_chunk(v128, target=4096):
    """Largest multiple of 128 <= target that divides v128 (v128 % 128 == 0)."""
    if v128 <= target:
        return v128
    best = 128
    c = 128
    while c <= target:
        if v128 % c == 0:
            best = c
        c += 128
    return best


def _choose_row_tile(n_rows, tile_v, itemsize, buf_budget, max_tile=2048):
    """Row tile so the double-buffered pred block fits `buf_budget` bytes
    (sized by the *input* dtype, so bf16 gets twice the rows of f32)."""
    tile = buf_budget // (2 * tile_v * itemsize)
    tile = int(min(max(tile, 8), max_tile))
    tile = (tile // 8) * 8
    n_ceil = ((n_rows + 7) // 8) * 8
    tile = max(8, min(tile, n_ceil))
    nblocks = -(-n_rows // tile)          # ceil
    return tile, nblocks, nblocks * tile


def label_smoothing_loss(pred, target, lengths, weights, smoothing=0.1,
                         max_tile=2048, vocab_chunk_target=4096):
    """pred: (B, T, V) log-probs; target: (B, T) int; lengths: (B,) int;
    weights: (B, T) float. Returns scalar loss (matches the PyTorch module)."""
    B, T, V = pred.shape
    confidence = 1.0 - smoothing
    off_value = smoothing / (V - 1)

    # sum_v td*log(td) is a compile-time constant (0*log 0 := 0, as KLDivLoss).
    h_const = 0.0
    if confidence > 0.0:
        h_const += confidence * math.log(confidence)
    if off_value > 0.0:
        h_const += (V - 1) * off_value * math.log(off_value)

    # Plain-JAX glue: lengths -> mask, fold mask*weights into one column.
    lengths = jnp.asarray(lengths, jnp.int32)
    mask = (jnp.arange(T, dtype=jnp.int32)[None, :]
            < lengths[:, None]).astype(jnp.float32)               # (B, T)
    mw = (mask * weights.astype(jnp.float32)).reshape(-1, 1)      # (N, 1)

    N = B * T
    pred2 = pred.reshape(N, V)
    tgt2 = target.reshape(N, 1).astype(jnp.int32)
    # pred at the target index: O(N) gather done in plain JAX, which removes
    # the iota/compare/select from the kernel entirely.
    pred_at_tgt = jnp.take_along_axis(pred2, tgt2, axis=-1).astype(jnp.float32)

    # Pad vocab to a lane multiple (zero log-probs add 0 to the row sum).
    v128 = ((V + 127) // 128) * 128
    if v128 != V:
        pred2 = jnp.pad(pred2, ((0, 0), (0, v128 - V)))

    cap, buf_budget = _vmem_budget()
    tile_v = _choose_vocab_chunk(v128, vocab_chunk_target)
    n_vchunks = v128 // tile_v
    itemsize = jnp.dtype(pred.dtype).itemsize
    tile_n, n_rtiles, n_pad = _choose_row_tile(N, tile_v, itemsize,
                                               buf_budget, max_tile)

    mw_pad = mw
    if n_pad != N:
        pred2 = jnp.pad(pred2, ((0, n_pad - N), (0, 0)))
        mw_pad = jnp.pad(mw, ((0, n_pad - N), (0, 0)))  # zero weight -> no effect

    dma_bytes = 2 * tile_n * tile_v * itemsize + 2 * tile_n * 4 + 2 * 8 * 128 * 4
    scratch_bytes = tile_n * 128 * 4
    vmem_limit = int(min(max(dma_bytes + scratch_bytes + (8 << 20), 32 << 20),
                         cap // 2))
    vmem_limit = max(vmem_limit, dma_bytes + scratch_bytes + (2 << 20))

    kernel = functools.partial(_weighted_rowsum_kernel,
                               lane_groups=tile_v // 128,
                               sublane_groups=tile_n // 8)

    # TODO(synk): on v7x, switching the row axis to pltpu.CORE_PARALLEL would
    # split row tiles across both TensorCores; "parallel" is kept so the same
    # code compiles unchanged on single-core v5e/v6e.
    partials = pl.pallas_call(
        kernel,
        out_shape=jax.ShapeDtypeStruct((8 * n_rtiles, 128), jnp.float32),
        grid_spec=pltpu.PrefetchScalarGridSpec(
            num_scalar_prefetch=0,
            grid=(n_rtiles, n_vchunks),
            in_specs=[
                pl.BlockSpec((tile_n, tile_v), lambda r, c: (r, c)),
                pl.BlockSpec((tile_n, 1), lambda r, c: (r, 0)),
            ],
            out_specs=pl.BlockSpec((8, 128), lambda r, c: (r, 0)),
            scratch_shapes=[pltpu.VMEM((tile_n, 128), jnp.float32)],
        ),
        compiler_params=pltpu.CompilerParams(
            dimension_semantics=("parallel", "arbitrary"),
            vmem_limit_bytes=vmem_limit),
    )(pred2, mw_pad)

    kernel_sum = jnp.sum(partials)              # sum_n mw_n * rowsum(pred_n)
    sum_mw = jnp.sum(mw)
    sum_mw_pat = jnp.sum(mw * pred_at_tgt)

    num = (h_const * sum_mw
           - off_value * kernel_sum
           - (confidence - off_value) * sum_mw_pat)
    den = jnp.sum(mask)   # module assumes at least one unmasked token
    return num / den


def _reference_loss(pred, target, lengths, weights, smoothing=0.1):
    """Pure-JAX reference mirroring the PyTorch forward, for validation."""
    B, T, V = pred.shape
    confidence = 1.0 - smoothing
    lengths = jnp.asarray(lengths, jnp.int32)
    mask = (jnp.arange(T)[None, :] < lengths[:, None]).astype(jnp.float32)
    p = pred.reshape(-1, V).astype(jnp.float32)
    t = target.reshape(-1)
    m = mask.reshape(-1)
    w = weights.reshape(-1).astype(jnp.float32)
    off = smoothing / (V - 1)
    td = jnp.full_like(p, off).at[jnp.arange(p.shape[0]), t].set(confidence)
    kl = td * (jnp.log(td) - p)
    return (kl.sum(1) * m * w).sum() / m.sum()


if __name__ == "__main__":
    key = jax.random.PRNGKey(0)
    k1, k2, k3, k4, k5, k6 = jax.random.split(key, 6)

    # Test 1: small shapes, single grid step, f32 input.
    B, T, V = 2, 8, 512
    logits = jax.random.normal(k1, (B, T, V), dtype=jnp.float32)
    pred = jax.nn.log_softmax(logits, axis=-1)       # KLDivLoss input = log-probs
    target = jax.random.randint(k2, (B, T), 0, V, dtype=jnp.int32)
    weights = jax.random.uniform(k3, (B, T), dtype=jnp.float32)
    lengths = [8, 5]                                 # max(lengths) == T

    loss = jax.block_until_ready(
        label_smoothing_loss(pred, target, lengths, weights, smoothing=0.1))
    ref = _reference_loss(pred, target, lengths, weights, smoothing=0.1)
    assert jnp.allclose(loss, ref, rtol=1e-5, atol=1e-5), (loss, ref)

    # Test 2: bf16 input, multi-block grid (3 row tiles x 4 vocab chunks,
    # padded rows) to exercise the tiled reduction + native-dtype DMA path.
    B2, T2, V2 = 2, 36, 1024
    logits2 = jax.random.normal(k4, (B2, T2, V2), dtype=jnp.float32)
    pred_b = jax.nn.log_softmax(logits2, axis=-1).astype(jnp.bfloat16)
    target2 = jax.random.randint(k5, (B2, T2), 0, V2, dtype=jnp.int32)
    weights2 = jax.random.uniform(k6, (B2, T2), dtype=jnp.float32)
    lengths2 = [36, 20]

    loss2 = jax.block_until_ready(
        label_smoothing_loss(pred_b, target2, lengths2, weights2, smoothing=0.1,
                             max_tile=32, vocab_chunk_target=256))
    ref2 = _reference_loss(pred_b, target2, lengths2, weights2, smoothing=0.1)
    assert jnp.allclose(loss2, ref2, rtol=2e-3, atol=2e-3), (loss2, ref2)

    print("KERNEL_OK")
</pallas_src>

<mosaic_0001>
module attributes {stable_mosaic.version = 11 : i64} {
  func.func @_weighted_rowsum_kernel(%arg0: i32, %arg1: i32, %arg2: memref<16x512xf32, #tpu.memory_space<vmem>>, %arg3: memref<16x1xf32, #tpu.memory_space<vmem>>, %arg4: memref<8x128xf32, #tpu.memory_space<vmem>>, %arg5: memref<16x128xf32, #tpu.memory_space<vmem>>) attributes {dimension_semantics = [#tpu.dimension_semantics<parallel>, #tpu.dimension_semantics<arbitrary>], iteration_bounds = array<i64: 1, 1>, scalar_prefetch = 0 : i64, scratch_operands = 1 : i64, tpu.core_type = #tpu.core_type<tc>, window_params = [{transform_indices = @transform_0, window_bounds = array<i64: 16, 512>}, {transform_indices = @transform_1, window_bounds = array<i64: 16, 1>}, {transform_indices = @transform_2, window_bounds = array<i64: 8, 128>}]} {
    %c0_i32 = arith.constant 0 : i32
    %0 = arith.cmpi eq, %arg1, %c0_i32 : i32
    %1 = arith.extui %0 : i1 to i32
    %c0_i32_0 = arith.constant 0 : i32
    %2 = arith.cmpi ne, %1, %c0_i32_0 : i32
    scf.if %2 {
      %cst = arith.constant 0.000000e+00 : f32
      %16 = vector.broadcast %cst : f32 to vector<16x128xf32>
      %c0_11 = arith.constant 0 : index
      %c0_12 = arith.constant 0 : index
      %17 = vector.load %arg5[%c0_11, %c0_12] : memref<16x128xf32, #tpu.memory_space<vmem>>, vector<16x128xf32>
      tpu.vector_store %arg5[%c0_11, %c0_12], %16 {strides = array<i32>} : memref<16x128xf32, #tpu.memory_space<vmem>>, vector<16x128xf32>,
    } else {
    }
    %c0 = arith.constant 0 : index
    %c0_1 = arith.constant 0 : index
    %3 = vector.load %arg5[%c0, %c0_1] : memref<16x128xf32, #tpu.memory_space<vmem>>, vector<16x128xf32>
    %c0_2 = arith.constant 0 : index
    %c0_3 = arith.constant 0 : index
    %4 = vector.load %arg2[%c0_2, %c0_3] : memref<16x512xf32, #tpu.memory_space<vmem>>, vector<16x128xf32>
    %5 = arith.addf %3, %4 : vector<16x128xf32>
    %c0_4 = arith.constant 0 : index
    %c128 = arith.constant 128 : index
    %6 = vector.load %arg2[%c0_4, %c128] : memref<16x512xf32, #tpu.memory_space<vmem>>, vector<16x128xf32>
    %7 = arith.addf %5, %6 : vector<16x128xf32>
    %c0_5 = arith.constant 0 : index
    %c256 = arith.constant 256 : index
    %8 = vector.load %arg2[%c0_5, %c256] : memref<16x512xf32, #tpu.memory_space<vmem>>, vector<16x128xf32>
    %9 = arith.addf %7, %8 : vector<16x128xf32>
    %c0_6 = arith.constant 0 : index
    %c384 = arith.constant 384 : index
    %10 = vector.load %arg2[%c0_6, %c384] : memref<16x512xf32, #tpu.memory_space<vmem>>, vector<16x128xf32>
    %11 = arith.addf %9, %10 : vector<16x128xf32>
    %c0_7 = arith.constant 0 : index
    %c0_8 = arith.constant 0 : index
    %12 = vector.load %arg5[%c0_7, %c0_8] : memref<16x128xf32, #tpu.memory_space<vmem>>, vector<16x128xf32>
    tpu.vector_store %arg5[%c0_7, %c0_8], %11 {strides = array<i32>} : memref<16x128xf32, #tpu.memory_space<vmem>>, vector<16x128xf32>,
    %c0_i32_9 = arith.constant 0 : i32
    %13 = arith.cmpi eq, %arg1, %c0_i32_9 : i32
    %14 = arith.extui %13 : i1 to i32
    %c0_i32_10 = arith.constant 0 : i32
    %15 = arith.cmpi ne, %14, %c0_i32_10 : i32
    scf.if %15 {
      %c0_11 = arith.constant 0 : index
      %c0_12 = arith.constant 0 : index
      %16 = vector.load %arg3[%c0_11, %c0_12] : memref<16x1xf32, #tpu.memory_space<vmem>>, vector<16x1xf32>
      %17 = vector.broadcast %16 : vector<16x1xf32> to vector<16x128xf32>
      %18 = arith.mulf %11, %17 : vector<16x128xf32>
      %19 = vector.extract_strided_slice %18 {offsets = [0, 0], sizes = [8, 128], strides = [1, 1]} : vector<16x128xf32> to vector<8x128xf32>
      %20 = vector.extract_strided_slice %18 {offsets = [8, 0], sizes = [8, 128], strides = [1, 1]} : vector<16x128xf32> to vector<8x128xf32>
      %21 = arith.addf %19, %20 : vector<8x128xf32>
      %c0_13 = arith.constant 0 : index
      %c0_14 = arith.constant 0 : index
      %22 = vector.load %arg4[%c0_13, %c0_14] : memref<8x128xf32, #tpu.memory_space<vmem>>, vector<8x128xf32>
      tpu.vector_store %arg4[%c0_13, %c0_14], %21 {strides = array<i32>} : memref<8x128xf32, #tpu.memory_space<vmem>>, vector<8x128xf32>,
    } else {
    }
    return
  }
  func.func @transform_0(%arg0: i32, %arg1: i32) -> (i32, i32) {
    %c0_i32 = arith.constant 0 : i32
    return %arg0, %arg1 : i32, i32
  }
  func.func @transform_1(%arg0: i32, %arg1: i32) -> (i32, i32) {
    %c0_i32 = arith.constant 0 : i32
    %c0_i32_0 = arith.constant 0 : i32
    return %arg0, %c0_i32 : i32, i32
  }
  func.func @transform_2(%arg0: i32, %arg1: i32) -> (i32, i32) {
    %c0_i32 = arith.constant 0 : i32
    %c0_i32_0 = arith.constant 0 : i32
    return %arg0, %c0_i32 : i32, i32
  }
}

</mosaic_0001>

<llo_original>
// kernel: tpu_custom_call.1
$region0: #{tpu_custom_call.1}
  #allocation0 [shape = 'u32[]', space=smem, size = 0x4, offset = 0x4, fixed_abs, tag = 'smem constant byte address 0x4 - core index']
  #allocation1 [shape = 'u32[144,128]{1,0:T(1,128)}', space=vmem, size = 0x12000, scoped, tag = 'internal scratch']
  #allocation2 [shape = 'f32[16,128]{1,0:T(8,128)}', space=vmem, size = 0x2000, scoped, tag = 'scratch operand']
  %s0 = inlined_call_operand.hbm [shape: f32[16,512], index: 0, kind: input, shape index: {}]
  %s1 = inlined_call_operand.vmem [shape: f32[16,1], index: 1, kind: input, shape index: {}]
  %s2 = inlined_call_operand.hbm [shape: f32[8,128], index: 2, kind: output, shape index: {}]
  %s3 = sld [smem:[#allocation0]]
  $region30: #{tpu_custom_call.1} parent=0
    _
  %s5 = ssub.s32 1, %s3
  %s6 = scalar_select 0, %s5, %s3
  $region1: #{tpu_custom_call.1} parent=0
    #allocation3 [shape = 'u8[32768]{0}', space=vmem, size = 0x8000, scoped, tag = 'input window, operand 0, single buffered']
    #allocation4 [shape = 's32[1]{0}', space=sflag, size = 0x4, scoped, tag = 'scoped memory for tpu_custom_call.1']
    #allocation5 [shape = 's32[1]{0}', space=sflag, size = 0x4, scoped, tag = 'scoped memory for tpu_custom_call.1']
    #allocation6 [shape = 'u8[4096]{0}', space=vmem, size = 0x1000, scoped, tag = 'output window, operand 0, single buffered']
    %7 = vsyncpa [#allocation4], 0
    %8 = vsyncpa [#allocation5], 0
    // Predicated region
    $region2: #{tpu_custom_call.1} parent=1 // pred_check
      _
    $region3: #{tpu_custom_call.1} parent=1 // pred_check_branch
      %10 = sbr.rel (0) target = $region5
    $region4: #{tpu_custom_call.1} parent=1 // pred_region
      %s12 = ssub.s32 1024, 1024
      %13 = vsyncadd [#allocation4], %s12
      %s14 = sshll.u32 [#allocation3], 4
      %s15 = int_to_ptr.vmem [resolvable:$true] %s14
      %20 = dma.hbm_to_vmem [thread:$0]  %s0, 1024, %s15, [#allocation4], 512, 512, 32
    $region5: #{tpu_custom_call.1} parent=1 // pred_fallthru
      _
    // Predicated region
    $region6: #{tpu_custom_call.1} parent=1 // pred_check
      _
    $region7: #{tpu_custom_call.1} parent=1 // pred_check_branch
      %22 = sbr.rel (0) target = $region9
    $region8: #{tpu_custom_call.1} parent=1 // pred_region
      _
    $region9: #{tpu_custom_call.1} parent=1 // pred_fallthru
      _
    // Predicated region
    $region10: #{tpu_custom_call.1} parent=1 // pred_check
      _
    $region11: #{tpu_custom_call.1} parent=1 // pred_check_branch
      %24 = sbr.rel (0) target = $region13
    $region12: #{tpu_custom_call.1} parent=1 // pred_region
      %25 = dma.done [#allocation4], 1024
    $region13: #{tpu_custom_call.1} parent=1 // pred_fallthru
      _
    %p26 = scmp.eq.s32.totalorder 0, 0
    // Predicated region
    $region14: #{tpu_custom_call.1} parent=1 // pred_check
      %p27 = pneg %p26
    $region15: #{tpu_custom_call.1} parent=1 // pred_check_branch
      %29 = sbr.rel (%p27) target = $region17
    $region16: #{tpu_custom_call.1} parent=1 // pred_region
      %30 = vst [vmem:[#allocation2] sm:$0xff] 0.0
      %31 = vst [vmem:[#allocation2 + $0x8] sm:$0xff] 0.0
    $region17: #{tpu_custom_call.1} parent=1 // pred_fallthru
      _
    %v32 = vld [vmem:[#allocation2] sm:$0xff]
    %v33 = vld [vmem:[#allocation2 + $0x8] sm:$0xff]
    %v34 = vld [vmem:[#allocation3] sm:$0xff]
    %v35 = vld [vmem:[#allocation3 + $0x20] sm:$0xff]
    %v36 = vadd.f32 %v32, %v34
    %v37 = vadd.f32 %v33, %v35
    %v38 = vld [vmem:[#allocation3 + $0x8] sm:$0xff]
    %v39 = vld [vmem:[#allocation3 + $0x28] sm:$0xff]
    %v40 = vadd.f32 %v36, %v38
    %v41 = vadd.f32 %v37, %v39
    %v42 = vld [vmem:[#allocation3 + $0x10] sm:$0xff]
    %v43 = vld [vmem:[#allocation3 + $0x30] sm:$0xff]
    %v44 = vadd.f32 %v40, %v42
    %v45 = vadd.f32 %v41, %v43
    %v46 = vld [vmem:[#allocation3 + $0x18] sm:$0xff]
    %v47 = vld [vmem:[#allocation3 + $0x38] sm:$0xff]
    %v48 = vadd.f32 %v44, %v46
    %v49 = vadd.f32 %v45, %v47
    %50 = vst [vmem:[#allocation2] sm:$0xff] %v48
    %51 = vst [vmem:[#allocation2 + $0x8] sm:$0xff] %v49
    // Predicated region
    $region18: #{tpu_custom_call.1} parent=1 // pred_check
      %p52 = pneg %p26
    $region19: #{tpu_custom_call.1} parent=1 // pred_check_branch
      %54 = sbr.rel (%p52) target = $region21
    $region20: #{tpu_custom_call.1} parent=1 // pred_region
      %v55 = vld [vmem:[%s1] sm:$0xff]
      %v56 = vld [vmem:[%s1 + $0x8] sm:$0xff]
      %58 = vset.pattern.permute.xlu0 0
      %59 = vperm.xlu0 %58, %v55
      %v60 = vpop.permute.xlu0 %59
      %63 = vset.pattern.permute.xlu0 0
      %64 = vperm.xlu0 %63, %v56
      %v65 = vpop.permute.xlu0 %64
      %v67 = vmul.f32 %v48, %v60
      %v68 = vmul.f32 %v49, %v65
      %v69 = vadd.f32 %v67, %v68
      %70 = vst [vmem:[#allocation6] sm:$0xff] %v69
    $region21: #{tpu_custom_call.1} parent=1 // pred_fallthru
      _
    // Predicated region
    $region22: #{tpu_custom_call.1} parent=1 // pred_check
      _
    $region23: #{tpu_custom_call.1} parent=1 // pred_check_branch
      %72 = sbr.rel (0) target = $region25
    $region24: #{tpu_custom_call.1} parent=1 // pred_region
      %s74 = ssub.s32 128, 128
      %75 = vsyncadd [#allocation5], %s74
      %s77 = sshll.u32 [#allocation6], 4
      %s78 = int_to_ptr.vmem [resolvable:$true] %s77
      %80 = dma.vmem_to_hbm [thread:$0]  %s78, 128, %s2, [#allocation5]
    $region25: #{tpu_custom_call.1} parent=1 // pred_fallthru
      _
    // Predicated region
    $region26: #{tpu_custom_call.1} parent=1 // pred_check
      _
    $region27: #{tpu_custom_call.1} parent=1 // pred_check_branch
      %82 = sbr.rel (0) target = $region29
    $region28: #{tpu_custom_call.1} parent=1 // pred_region
      %83 = dma.done [#allocation5], 128
    $region29: #{tpu_custom_call.1} parent=1 // pred_fallthru
      _
    %84 = vsyncpa [#allocation4], 1
    %85 = vsyncpa [#allocation5], 1

</llo_original>
